<compile_context>
chip_gen: v7x
topology: tpu7x:2x2x1
jax: 0.10.0
libtpu: 0.0.40
codegen_flags: <defaults>
</compile_context>

<pallas_src>
import functools

import jax
import jax.numpy as jnp
from jax.experimental import pallas as pl
from jax.experimental.pallas import tpu as pltpu


def _round_up(x, n):
    return ((x + n - 1) // n) * n


def _convcnp_decoder_kernel(xt_ref, xgs_ref, zgw_ref, invl_ref, b_ref,
                            out_ref, acc_ref, xts_ref, hxn2_ref,
                            *, use_bf16_matmul=False):
    s = pl.program_id(2)

    # ---- once per (batch, nt-tile): scale targets, cache 0.5*||xt/l||^2, zero acc
    @pl.when(s == 0)
    def _init():
        xts = xt_ref[0] * invl_ref[...]                            # [TNT, dx]
        xts_ref[...] = xts
        hxn2_ref[...] = 0.5 * jnp.sum(xts * xts, axis=-1, keepdims=True)
        acc_ref[...] = jnp.zeros_like(acc_ref)

    # ---- per S-tile work
    xgs = xgs_ref[0]                                               # [dx, TS] pre-scaled
    hgn2 = 0.5 * jnp.sum(xgs * xgs, axis=0, keepdims=True)         # [1, TS] lane-dense

    # Cross term on the MXU (K = dx is tiny, but the MXU slack is free here —
    # the exp over [TNT, TS] is the critical unit).
    cross = jnp.dot(xts_ref[...], xgs,
                    preferred_element_type=jnp.float32)            # [TNT, TS]

    # exp(-0.5 * dist2) via the expanded form; argument <= ~0 by construction
    # (tiny positive values from float error only give exp ~= 1, harmless).
    w = jnp.exp(cross - hgn2 - hxn2_ref[...])                      # [TNT, TS]

    zgw = zgw_ref[0]                                               # [TS, dy]
    if use_bf16_matmul:                                            # optional (v6e/v7x)
        w = w.astype(jnp.bfloat16)
        zgw = zgw.astype(jnp.bfloat16)
    acc_ref[...] += jnp.dot(w, zgw, preferred_element_type=jnp.float32)

    # ---- finalize: add bias, store the output exactly once per (batch, nt-tile)
    @pl.when(s == pl.num_programs(2) - 1)
    def _done():
        out_ref[0] = (acc_ref[...] + b_ref[...]).astype(out_ref.dtype)


def convcnp_decoder(grids, xt, lengthscale, w_resizer, b_resizer,
                    scaling_factor, *, tnt=256, ts=2048, use_bf16_matmul=False):
    x_grid, z_grid = grids
    m = x_grid.shape[0]
    dx = x_grid.shape[-1]
    dz = z_grid.shape[-1]
    dy = w_resizer.shape[1]
    nt = xt.shape[1]

    assert tnt % 8 == 0 and ts % 128 == 0

    # flatten_grid: [m, n1..nd, d] -> [m, S, d]  (glue, no compute)
    x_g = x_grid.reshape(m, -1, dx).astype(jnp.float32)
    z_g = z_grid.reshape(m, -1, dz).astype(jnp.float32)
    S = x_g.shape[1]

    inv_l = (1.0 / lengthscale).reshape(1, dx).astype(jnp.float32)

    # Pre-fuse resizer + 1/scaling_factor into the grid features (dy << dz):
    #   (w @ z_g / sf) @ W == w @ (z_g @ (W / sf))
    w_fused = w_resizer.astype(jnp.float32) / jnp.float32(scaling_factor)
    zgw = jnp.einsum("msd,de->mse", z_g, w_fused)                  # [m, S, dy]

    # Lane-dense grid coordinates, pre-scaled by 1/lengthscale: [m, dx, S]
    xgs = jnp.swapaxes(x_g, -1, -2) * inv_l.reshape(1, dx, 1)

    b = b_resizer.reshape(1, dy).astype(jnp.float32)
    xt = xt.astype(jnp.float32)

    # Tile sizes (clamped to the problem) and padding to tile multiples.
    TNT = min(tnt, _round_up(nt, 8))
    TS = min(ts, _round_up(S, 128))
    nt_pad = _round_up(nt, TNT)
    s_pad = _round_up(S, TS)

    if nt_pad != nt:
        xt = jnp.pad(xt, ((0, 0), (0, nt_pad - nt), (0, 0)))
    if s_pad != S:
        xgs = jnp.pad(xgs, ((0, 0), (0, 0), (0, s_pad - S)))
        # zero features for padded grid points -> they contribute nothing.
        zgw = jnp.pad(zgw, ((0, 0), (0, s_pad - S), (0, 0)))

    grid = (m, nt_pad // TNT, s_pad // TS)

    # Explicit VMEM budget: double-buffered blocks + [TNT, TS] intermediates
    # (cross / arg / weights) + scratch, with 2x headroom, capped at 64 MiB so
    # the same tile choice stays legal on v7x.
    est_bytes = 4 * (2 * (TNT * dx + dx * TS + TS * dy + TNT * dy + dx + dy)
                     + 3 * TNT * TS
                     + TNT * dy + TNT * dx + TNT)
    vmem_limit = int(min(max(2 * est_bytes, 32 * 1024 * 1024), 64 * 1024 * 1024))

    kernel = functools.partial(_convcnp_decoder_kernel,
                               use_bf16_matmul=use_bf16_matmul)

    out = pl.pallas_call(
        kernel,
        out_shape=jax.ShapeDtypeStruct((m, nt_pad, dy), jnp.float32),
        grid_spec=pltpu.PrefetchScalarGridSpec(
            num_scalar_prefetch=0,
            grid=grid,
            in_specs=[
                pl.BlockSpec((1, TNT, dx), lambda i, j, s: (i, j, 0)),  # xt
                pl.BlockSpec((1, dx, TS), lambda i, j, s: (i, 0, s)),   # x_g / l, [dx,S]
                pl.BlockSpec((1, TS, dy), lambda i, j, s: (i, s, 0)),   # z_g @ (W/sf)
                pl.BlockSpec((1, dx), lambda i, j, s: (0, 0)),          # 1/lengthscale
                pl.BlockSpec((1, dy), lambda i, j, s: (0, 0)),          # bias
            ],
            out_specs=pl.BlockSpec((1, TNT, dy), lambda i, j, s: (i, j, 0)),
            scratch_shapes=[
                pltpu.VMEM((TNT, dy), jnp.float32),   # accumulator
                pltpu.VMEM((TNT, dx), jnp.float32),   # scaled xt tile
                pltpu.VMEM((TNT, 1), jnp.float32),    # 0.5*||xt/l||^2
            ],
        ),
        compiler_params=pltpu.CompilerParams(
            dimension_semantics=("parallel", "parallel", "arbitrary"),
            vmem_limit_bytes=vmem_limit,
        ),
    )(xt, xgs, zgw, inv_l, b)

    return out[:, :nt, :]


def _reference(grids, xt, lengthscale, w_resizer, b_resizer, scaling_factor):
    x_grid, z_grid = grids
    m = x_grid.shape[0]
    dx, dz = x_grid.shape[-1], z_grid.shape[-1]
    x_g = x_grid.reshape(m, -1, dx)
    z_g = z_grid.reshape(m, -1, dz)
    diff = (xt[:, :, None, :] - x_g[:, None, :, :]) / lengthscale
    dist2 = jnp.sum(diff * diff, axis=-1)
    w = jnp.exp(-0.5 * dist2)
    zt = jnp.einsum("mts,msd->mtd", w, z_g) / scaling_factor
    return zt @ w_resizer + b_resizer


if __name__ == "__main__":
    # Small shapes consistent with the module's forward:
    #   m=2 batches, 16x16 grid (S=256), dx=2 input dims, dz=16 grid-feature dims,
    #   nt=16 target points, dy=3 output dims.
    # Small tiles (tnt=8, ts=128) so the demo exercises the (m, nt, S) tiling
    # and the S-axis accumulator (grid = (2, 2, 2)).
    m, gh, gw, dx, dz, nt, dy = 2, 16, 16, 2, 16, 16, 3
    scaling_factor = 2.0

    key = jax.random.PRNGKey(0)
    k1, k2, k3, k4, _ = jax.random.split(key, 5)

    # Grid coordinates: a regular [-1, 1]^2 grid, broadcast over batch.
    xs = jnp.linspace(-1.0, 1.0, gh)
    ys = jnp.linspace(-1.0, 1.0, gw)
    gx, gy = jnp.meshgrid(xs, ys, indexing="ij")
    x_grid = jnp.broadcast_to(jnp.stack([gx, gy], axis=-1)[None],
                              (m, gh, gw, dx)).astype(jnp.float32)
    z_grid = jax.random.normal(k1, (m, gh, gw, dz), dtype=jnp.float32)
    xt = jax.random.uniform(k2, (m, nt, dx), minval=-1.0, maxval=1.0,
                            dtype=jnp.float32)

    # SetConvDecoder lengthscale: 1e-5 + softplus(log(expm1(init))) == init + 1e-5.
    init_lengthscale = 0.3
    ls_param = jnp.log(jnp.expm1(jnp.full((dx,), init_lengthscale, jnp.float32)))
    lengthscale = 1e-5 + jax.nn.softplus(ls_param)                 # [dx]

    # Resizer = Linear(dz, dy), PyTorch-style uniform init, deterministic.
    bound = 1.0 / jnp.sqrt(jnp.float32(dz))
    w_resizer = jax.random.uniform(k3, (dz, dy), minval=-bound, maxval=bound,
                                   dtype=jnp.float32)
    b_resizer = jax.random.uniform(k4, (dy,), minval=-bound, maxval=bound,
                                   dtype=jnp.float32)

    out = convcnp_decoder((x_grid, z_grid), xt, lengthscale,
                          w_resizer, b_resizer, scaling_factor,
                          tnt=8, ts=128)
    out = jax.block_until_ready(out)

    ref = _reference((x_grid, z_grid), xt, lengthscale,
                     w_resizer, b_resizer, scaling_factor)
    assert out.shape == (m, nt, dy), out.shape
    # Tolerance accounts for MXU default-precision matmuls and the
    # (w @ z_g / sf) @ W  ->  w @ (z_g @ (W / sf)) re-association.
    assert jnp.allclose(out, ref, rtol=1e-3, atol=1e-3), (
        float(jnp.max(jnp.abs(out - ref))))

    print("KERNEL_OK")
</pallas_src>

<mosaic_0001>
module attributes {stable_mosaic.version = 11 : i64} {
  func.func @_convcnp_decoder_kernel(%arg0: i32, %arg1: i32, %arg2: i32, %arg3: memref<1x8x2xf32, #tpu.memory_space<vmem>>, %arg4: memref<1x2x128xf32, #tpu.memory_space<vmem>>, %arg5: memref<1x128x3xf32, #tpu.memory_space<vmem>>, %arg6: memref<1x2xf32, #tpu.memory_space<vmem>>, %arg7: memref<1x3xf32, #tpu.memory_space<vmem>>, %arg8: memref<1x8x3xf32, #tpu.memory_space<vmem>>, %arg9: memref<8x3xf32, #tpu.memory_space<vmem>>, %arg10: memref<8x2xf32, #tpu.memory_space<vmem>>, %arg11: memref<8x1xf32, #tpu.memory_space<vmem>>) attributes {dimension_semantics = [#tpu.dimension_semantics<parallel>, #tpu.dimension_semantics<parallel>, #tpu.dimension_semantics<arbitrary>], iteration_bounds = array<i64: 2, 2, 2>, scalar_prefetch = 0 : i64, scratch_operands = 3 : i64, tpu.core_type = #tpu.core_type<tc>, window_params = [{transform_indices = @transform_0, window_bounds = array<i64: 1, 8, 2>}, {transform_indices = @transform_1, window_bounds = array<i64: 1, 2, 128>}, {transform_indices = @transform_2, window_bounds = array<i64: 1, 128, 3>}, {pipeline_mode = #tpu.pipeline_mode<synchronous>, transform_indices = @transform_3, window_bounds = array<i64: 1, 2>}, {pipeline_mode = #tpu.pipeline_mode<synchronous>, transform_indices = @transform_4, window_bounds = array<i64: 1, 3>}, {transform_indices = @transform_5, window_bounds = array<i64: 1, 8, 3>}]} {
    %c0_i32 = arith.constant 0 : i32
    %0 = arith.cmpi eq, %arg2, %c0_i32 : i32
    %1 = arith.extui %0 : i1 to i32
    %c0_i32_0 = arith.constant 0 : i32
    %2 = arith.cmpi ne, %1, %c0_i32_0 : i32
    scf.if %2 {
      %c0_18 = arith.constant 0 : index
      %c0_19 = arith.constant 0 : index
      %c0_20 = arith.constant 0 : index
      %27 = vector.load %arg3[%c0_18, %c0_19, %c0_20] : memref<1x8x2xf32, #tpu.memory_space<vmem>>, vector<1x8x2xf32>
      %28 = vector.shape_cast %27 : vector<1x8x2xf32> to vector<8x2xf32>
      %c0_21 = arith.constant 0 : index
      %c0_22 = arith.constant 0 : index
      %29 = vector.load %arg6[%c0_21, %c0_22] : memref<1x2xf32, #tpu.memory_space<vmem>>, vector<1x2xf32>
      %30 = vector.broadcast %29 : vector<1x2xf32> to vector<8x2xf32>
      %31 = arith.mulf %28, %30 : vector<8x2xf32>
      %c0_23 = arith.constant 0 : index
      %c0_24 = arith.constant 0 : index
      %32 = vector.load %arg10[%c0_23, %c0_24] : memref<8x2xf32, #tpu.memory_space<vmem>>, vector<8x2xf32>
      tpu.vector_store %arg10[%c0_23, %c0_24], %31 {strides = array<i32>} : memref<8x2xf32, #tpu.memory_space<vmem>>, vector<8x2xf32>,
      %33 = arith.mulf %31, %31 : vector<8x2xf32>
      %cst_25 = arith.constant dense<0.000000e+00> : vector<8xf32>
      %34 = vector.multi_reduction <add>, %33, %cst_25 [1] : vector<8x2xf32> to vector<8xf32>
      %35 = vector.shape_cast %34 : vector<8xf32> to vector<8x1xf32>
      %cst_26 = arith.constant 5.000000e-01 : f32
      %36 = vector.broadcast %cst_26 : f32 to vector<8x1xf32>
      %37 = arith.mulf %36, %35 : vector<8x1xf32>
      %c0_27 = arith.constant 0 : index
      %c0_28 = arith.constant 0 : index
      %38 = vector.load %arg11[%c0_27, %c0_28] : memref<8x1xf32, #tpu.memory_space<vmem>>, vector<8x1xf32>
      tpu.vector_store %arg11[%c0_27, %c0_28], %37 {strides = array<i32>} : memref<8x1xf32, #tpu.memory_space<vmem>>, vector<8x1xf32>,
      %cst_29 = arith.constant 0.000000e+00 : f32
      %39 = vector.broadcast %cst_29 : f32 to vector<8x3xf32>
      %c0_30 = arith.constant 0 : index
      %c0_31 = arith.constant 0 : index
      %40 = vector.load %arg9[%c0_30, %c0_31] : memref<8x3xf32, #tpu.memory_space<vmem>>, vector<8x3xf32>
      tpu.vector_store %arg9[%c0_30, %c0_31], %39 {strides = array<i32>} : memref<8x3xf32, #tpu.memory_space<vmem>>, vector<8x3xf32>,
    } else {
    }
    %c0 = arith.constant 0 : index
    %c0_1 = arith.constant 0 : index
    %c0_2 = arith.constant 0 : index
    %3 = vector.load %arg4[%c0, %c0_1, %c0_2] : memref<1x2x128xf32, #tpu.memory_space<vmem>>, vector<1x2x128xf32>
    %4 = vector.shape_cast %3 : vector<1x2x128xf32> to vector<2x128xf32>
    %5 = arith.mulf %4, %4 : vector<2x128xf32>
    %cst = arith.constant dense<0.000000e+00> : vector<128xf32>
    %6 = vector.multi_reduction <add>, %5, %cst [0] : vector<2x128xf32> to vector<128xf32>
    %7 = vector.shape_cast %6 : vector<128xf32> to vector<1x128xf32>
    %cst_3 = arith.constant 5.000000e-01 : f32
    %8 = vector.broadcast %cst_3 : f32 to vector<1x128xf32>
    %9 = arith.mulf %8, %7 : vector<1x128xf32>
    %c0_4 = arith.constant 0 : index
    %c0_5 = arith.constant 0 : index
    %10 = vector.load %arg10[%c0_4, %c0_5] : memref<8x2xf32, #tpu.memory_space<vmem>>, vector<8x2xf32>
    %cst_6 = arith.constant dense<0.000000e+00> : vector<8x128xf32>
    %11 = tpu.matmul %10, %4, %cst_6 {dimension_numbers = #tpu.dot_dimension_numbers<[1], [0], [0], [1], [0, 0, 1, 1], [], []>} : vector<8x2xf32>, vector<2x128xf32>, vector<8x128xf32> -> vector<8x128xf32>
    %12 = vector.broadcast %9 : vector<1x128xf32> to vector<8x128xf32>
    %13 = arith.subf %11, %12 : vector<8x128xf32>
    %c0_7 = arith.constant 0 : index
    %c0_8 = arith.constant 0 : index
    %14 = vector.load %arg11[%c0_7, %c0_8] : memref<8x1xf32, #tpu.memory_space<vmem>>, vector<8x1xf32>
    %15 = vector.broadcast %14 : vector<8x1xf32> to vector<8x128xf32>
    %16 = arith.subf %13, %15 : vector<8x128xf32>
    %17 = math.exp %16 : vector<8x128xf32>
    %c0_9 = arith.constant 0 : index
    %c0_10 = arith.constant 0 : index
    %c0_11 = arith.constant 0 : index
    %18 = vector.load %arg5[%c0_9, %c0_10, %c0_11] : memref<1x128x3xf32, #tpu.memory_space<vmem>>, vector<1x128x3xf32>
    %19 = vector.shape_cast %18 : vector<1x128x3xf32> to vector<128x3xf32>
    %c0_12 = arith.constant 0 : index
    %c0_13 = arith.constant 0 : index
    %20 = vector.load %arg9[%c0_12, %c0_13] : memref<8x3xf32, #tpu.memory_space<vmem>>, vector<8x3xf32>
    %cst_14 = arith.constant dense<0.000000e+00> : vector<8x3xf32>
    %21 = tpu.matmul %17, %19, %cst_14 {dimension_numbers = #tpu.dot_dimension_numbers<[1], [0], [0], [1], [0, 0, 1, 1], [], []>} : vector<8x128xf32>, vector<128x3xf32>, vector<8x3xf32> -> vector<8x3xf32>
    %22 = arith.addf %20, %21 : vector<8x3xf32>
    %c0_15 = arith.constant 0 : index
    %c0_16 = arith.constant 0 : index
    %23 = vector.load %arg9[%c0_15, %c0_16] : memref<8x3xf32, #tpu.memory_space<vmem>>, vector<8x3xf32>
    tpu.vector_store %arg9[%c0_15, %c0_16], %22 {strides = array<i32>} : memref<8x3xf32, #tpu.memory_space<vmem>>, vector<8x3xf32>,
    %c1_i32 = arith.constant 1 : i32
    %24 = arith.cmpi eq, %arg2, %c1_i32 : i32
    %25 = arith.extui %24 : i1 to i32
    %c0_i32_17 = arith.constant 0 : i32
    %26 = arith.cmpi ne, %25, %c0_i32_17 : i32
    scf.if %26 {
      %c0_18 = arith.constant 0 : index
      %c0_19 = arith.constant 0 : index
      %27 = vector.load %arg9[%c0_18, %c0_19] : memref<8x3xf32, #tpu.memory_space<vmem>>, vector<8x3xf32>
      %c0_20 = arith.constant 0 : index
      %c0_21 = arith.constant 0 : index
      %28 = vector.load %arg7[%c0_20, %c0_21] : memref<1x3xf32, #tpu.memory_space<vmem>>, vector<1x3xf32>
      %29 = vector.broadcast %28 : vector<1x3xf32> to vector<8x3xf32>
      %30 = arith.addf %27, %29 : vector<8x3xf32>
      %c0_22 = arith.constant 0 : index
      %c0_23 = arith.constant 0 : index
      %c0_24 = arith.constant 0 : index
      %31 = vector.load %arg8[%c0_22, %c0_23, %c0_24] : memref<1x8x3xf32, #tpu.memory_space<vmem>>, vector<1x8x3xf32>
      %32 = vector.shape_cast %31 : vector<1x8x3xf32> to vector<8x3xf32>
      %33 = vector.shape_cast %30 : vector<8x3xf32> to vector<1x8x3xf32>
      tpu.vector_store %arg8[%c0_22, %c0_23, %c0_24], %33 {strides = array<i32>} : memref<1x8x3xf32, #tpu.memory_space<vmem>>, vector<1x8x3xf32>,
    } else {
    }
    return
  }
  func.func @transform_0(%arg0: i32, %arg1: i32, %arg2: i32) -> (i32, i32, i32) {
    %c0_i32 = arith.constant 0 : i32
    %c0_i32_0 = arith.constant 0 : i32
    return %arg0, %arg1, %c0_i32 : i32, i32, i32
  }
  func.func @transform_1(%arg0: i32, %arg1: i32, %arg2: i32) -> (i32, i32, i32) {
    %c0_i32 = arith.constant 0 : i32
    %c0_i32_0 = arith.constant 0 : i32
    return %arg0, %c0_i32, %arg2 : i32, i32, i32
  }
  func.func @transform_2(%arg0: i32, %arg1: i32, %arg2: i32) -> (i32, i32, i32) {
    %c0_i32 = arith.constant 0 : i32
    %c0_i32_0 = arith.constant 0 : i32
    return %arg0, %arg2, %c0_i32 : i32, i32, i32
  }
  func.func @transform_3(%arg0: i32, %arg1: i32, %arg2: i32) -> (i32, i32) {
    %c0_i32 = arith.constant 0 : i32
    %c0_i32_0 = arith.constant 0 : i32
    %c0_i32_1 = arith.constant 0 : i32
    return %c0_i32, %c0_i32_0 : i32, i32
  }
  func.func @transform_4(%arg0: i32, %arg1: i32, %arg2: i32) -> (i32, i32) {
    %c0_i32 = arith.constant 0 : i32
    %c0_i32_0 = arith.constant 0 : i32
    %c0_i32_1 = arith.constant 0 : i32
    return %c0_i32, %c0_i32_0 : i32, i32
  }
  func.func @transform_5(%arg0: i32, %arg1: i32, %arg2: i32) -> (i32, i32, i32) {
    %c0_i32 = arith.constant 0 : i32
    %c0_i32_0 = arith.constant 0 : i32
    return %arg0, %arg1, %c0_i32 : i32, i32, i32
  }
}

</mosaic_0001>

<llo_original>
// kernel: tpu_custom_call.1
$region0: #{tpu_custom_call.1}
  #allocation0 [shape = 'u32[]', space=smem, size = 0x4, offset = 0x4, fixed_abs, tag = 'smem constant byte address 0x4 - core index']
  #allocation1 [shape = 'u32[144,128]{1,0:T(1,128)}', space=vmem, size = 0x12000, scoped, tag = 'internal scratch']
  #allocation2 [shape = 'f32[8,3]{1,0:T(8,128)}', space=vmem, size = 0x1000, scoped, tag = 'scratch operand']
  #allocation3 [shape = 'f32[8,2]{1,0:T(8,128)}', space=vmem, size = 0x1000, scoped, tag = 'scratch operand']
  #allocation4 [shape = 'f32[8,1]{1,0:T(8,128)}', space=vmem, size = 0x1000, scoped, tag = 'scratch operand']
  %s0 = inlined_call_operand.vmem [shape: f32[2,16,2], index: 0, kind: input, shape index: {}]
  %s1 = inlined_call_operand.vmem [shape: f32[2,2,256], index: 1, kind: input, shape index: {}]
  %s2 = inlined_call_operand.vmem [shape: f32[2,256,3], index: 2, kind: input, shape index: {}]
  %s3 = inlined_call_operand.vmem [shape: f32[1,2], index: 3, kind: input, shape index: {}]
  %s4 = inlined_call_operand.vmem [shape: f32[1,3], index: 4, kind: input, shape index: {}]
  %s5 = inlined_call_operand.vmem [shape: f32[2,16,3], index: 5, kind: output, shape index: {}]
  %s6 = sld [smem:[#allocation0]]
  $region61: #{tpu_custom_call.1} parent=0
    _
  %s8 = ssub.s32 1, %s6
  %s9 = scalar_select 0, %s8, %s6
  loop: start=0, step=1, limit=10
  $region2: #{tpu_custom_call.1} parent=0 // loop_pre_header
    _
  $region3: #{tpu_custom_call.1} parent=0 // loop_header
    %s11 = sphi 0, %s15
    %p12 = scmp.ge.s32.totalorder %s11, 10
    %s18 = sphi 0, %s37
    %s19 = sphi 0, %s33
    %s20 = sphi 0, %s29
    %s21 = sphi 0, %s18
    %s22 = sphi 0, %s19
    %s23 = sphi 0, %s20
    %s24 = sphi 0, %s21
    %s25 = sphi 0, %s22
    %s26 = sphi 0, %s23
    %s42 = sphi 0, %s44
    %s45 = sphi 0, %s42
    %s46 = sphi 0, %s45
    %s62 = sphi 0, %s46
    %s70 = sphi 0, %s72
    %s73 = sphi 0, %s70
    %s74 = sphi 0, %s73
    %s90 = sphi 0, %s74
    %s98 = sphi 0, %s100
    %s101 = sphi 0, %s98
    %s102 = sphi 0, %s101
    %s118 = sphi 0, %s102
    %s122 = sphi 0, %s122
    %s124 = sphi 0, %s122
    %s125 = sphi 0, %s124
    %s139 = sphi 0, %s125
    %s143 = sphi 0, %s143
    %s145 = sphi 0, %s143
    %s146 = sphi 0, %s145
    %s160 = sphi 0, %s146
    %s168 = sphi 0, %s170
    %s171 = sphi 0, %s168
    %s172 = sphi 0, %s171
    %s188 = sphi 0, %s172
  $region4: #{tpu_custom_call.1} parent=0 // loop_header_branch
    %14 = sbr.rel (%p12) target = $region8
  $region5: #{tpu_custom_call.1} parent=0 // loop_body
    %s16 = ssub.s32 %s11, 1
    %s17 = ssub.s32 %s11, 2
    %s27 = sadd.s32 1, %s20
    %p28 = scmp.ge.s32.totalorder %s27, 2
    %s29 = scalar_select %p28, 0, %s27
    %s30 = sadd.s32 1, %s19
    %s31 = scalar_select %p28, %s30, %s19
    %p32 = scmp.ge.s32.totalorder %s31, 2
    %s33 = scalar_select %p32, 0, %s31
    %s34 = sadd.s32 1, %s18
    %s35 = scalar_select %p32, %s34, %s18
    %p36 = scmp.ge.s32.totalorder %s35, 2
    %s37 = scalar_select %p36, 0, %s35
    %s38 = ssub.s32 %s18, %s37
    %s39 = ssub.s32 %s19, %s33
    %s40 = sor.u32 %s38, %s39
    %p41 = scmp.eq.s32.totalorder %s40, 0
    %s43 = sadd.s32 %s42, 1
    %s44 = scalar_select %p41, %s42, %s43
    %p47 = pneg %p41
    %p48 = scmp.eq.s32.totalorder %s11, 7
    %p49 = por %p47, %p48
    %p50 = scmp.ne.s32.totalorder %s42, %s45
    %p51 = scmp.eq.s32.totalorder %s11, 0
    %p52 = por %p50, %p51
    %p53 = scmp.ne.s32.totalorder %s42, %s45
    %p54 = scmp.eq.s32.totalorder %s16, 7
    %p55 = por %p53, %p54
    %p56 = scmp.ne.s32.totalorder %s45, %s46
    %p57 = scmp.eq.s32.totalorder %s16, 0
    %p58 = por %p56, %p57
    %p59 = scmp.ne.s32.totalorder %s45, %s46
    %p60 = scmp.eq.s32.totalorder %s17, 7
    %p61 = por %p59, %p60
    %p63 = scmp.ne.s32.totalorder %s46, %s62
    %p64 = scmp.eq.s32.totalorder %s17, 0
    %p65 = por %p63, %p64
    %s66 = ssub.s32 %s18, %s37
    %s67 = ssub.s32 %s20, %s29
    %s68 = sor.u32 %s66, %s67
    %p69 = scmp.eq.s32.totalorder %s68, 0
    %s71 = sadd.s32 %s70, 1
    %s72 = scalar_select %p69, %s70, %s71
    %p75 = pneg %p69
    %p76 = scmp.eq.s32.totalorder %s11, 7
    %p77 = por %p75, %p76
    %p78 = scmp.ne.s32.totalorder %s70, %s73
    %p79 = scmp.eq.s32.totalorder %s11, 0
    %p80 = por %p78, %p79
    %p81 = scmp.ne.s32.totalorder %s70, %s73
    %p82 = scmp.eq.s32.totalorder %s16, 7
    %p83 = por %p81, %p82
    %p84 = scmp.ne.s32.totalorder %s73, %s74
    %p85 = scmp.eq.s32.totalorder %s16, 0
    %p86 = por %p84, %p85
    %p87 = scmp.ne.s32.totalorder %s73, %s74
    %p88 = scmp.eq.s32.totalorder %s17, 7
    %p89 = por %p87, %p88
    %p91 = scmp.ne.s32.totalorder %s74, %s90
    %p92 = scmp.eq.s32.totalorder %s17, 0
    %p93 = por %p91, %p92
    %s94 = ssub.s32 %s18, %s37
    %s95 = ssub.s32 %s20, %s29
    %s96 = sor.u32 %s94, %s95
    %p97 = scmp.eq.s32.totalorder %s96, 0
    %s99 = sadd.s32 %s98, 1
    %s100 = scalar_select %p97, %s98, %s99
    %p103 = pneg %p97
    %p104 = scmp.eq.s32.totalorder %s11, 7
    %p105 = por %p103, %p104
    %p106 = scmp.ne.s32.totalorder %s98, %s101
    %p107 = scmp.eq.s32.totalorder %s11, 0
    %p108 = por %p106, %p107
    %p109 = scmp.ne.s32.totalorder %s98, %s101
    %p110 = scmp.eq.s32.totalorder %s16, 7
    %p111 = por %p109, %p110
    %p112 = scmp.ne.s32.totalorder %s101, %s102
    %p113 = scmp.eq.s32.totalorder %s16, 0
    %p114 = por %p112, %p113
    %p115 = scmp.ne.s32.totalorder %s101, %s102
    %p116 = scmp.eq.s32.totalorder %s17, 7
    %p117 = por %p115, %p116
    %p119 = scmp.ne.s32.totalorder %s102, %s118
    %p120 = scmp.eq.s32.totalorder %s17, 0
    %p121 = por %p119, %p120
    %s123 = sadd.s32 %s122, 1
    %p126 = scmp.eq.s32.totalorder %s11, 7
    %p127 = scmp.ne.s32.totalorder %s122, %s124
    %p128 = scmp.eq.s32.totalorder %s11, 0
    %p129 = por %p127, %p128
    %p130 = scmp.ne.s32.totalorder %s122, %s124
    %p131 = scmp.eq.s32.totalorder %s16, 7
    %p132 = por %p130, %p131
    %p133 = scmp.ne.s32.totalorder %s124, %s125
    %p134 = scmp.eq.s32.totalorder %s16, 0
    %p135 = por %p133, %p134
    %p136 = scmp.ne.s32.totalorder %s124, %s125
    %p137 = scmp.eq.s32.totalorder %s17, 7
    %p138 = por %p136, %p137
    %p140 = scmp.ne.s32.totalorder %s125, %s139
    %p141 = scmp.eq.s32.totalorder %s17, 0
    %p142 = por %p140, %p141
    %s144 = sadd.s32 %s143, 1
    %p147 = scmp.eq.s32.totalorder %s11, 7
    %p148 = scmp.ne.s32.totalorder %s143, %s145
    %p149 = scmp.eq.s32.totalorder %s11, 0
    %p150 = por %p148, %p149
    %p151 = scmp.ne.s32.totalorder %s143, %s145
    %p152 = scmp.eq.s32.totalorder %s16, 7
    %p153 = por %p151, %p152
    %p154 = scmp.ne.s32.totalorder %s145, %s146
    %p155 = scmp.eq.s32.totalorder %s16, 0
    %p156 = por %p154, %p155
    %p157 = scmp.ne.s32.totalorder %s145, %s146
    %p158 = scmp.eq.s32.totalorder %s17, 7
    %p159 = por %p157, %p158
    %p161 = scmp.ne.s32.totalorder %s146, %s160
    %p162 = scmp.eq.s32.totalorder %s17, 0
    %p163 = por %p161, %p162
    %s164 = ssub.s32 %s18, %s37
    %s165 = ssub.s32 %s19, %s33
    %s166 = sor.u32 %s164, %s165
    %p167 = scmp.eq.s32.totalorder %s166, 0
    %s169 = sadd.s32 %s168, 1
    %s170 = scalar_select %p167, %s168, %s169
    %p173 = pneg %p167
    %p174 = scmp.eq.s32.totalorder %s11, 7
    %p175 = por %p173, %p174
    %p176 = scmp.ne.s32.totalorder %s168, %s171
    %p177 = scmp.eq.s32.totalorder %s11, 0
    %p178 = por %p176, %p177
    %p179 = scmp.ne.s32.totalorder %s168, %s171
    %p180 = scmp.eq.s32.totalorder %s16, 7
    %p181 = por %p179, %p180
    %p182 = scmp.ne.s32.totalorder %s171, %s172
    %p183 = scmp.eq.s32.totalorder %s16, 0
    %p184 = por %p182, %p183
    %p185 = scmp.ne.s32.totalorder %s171, %s172
    %p186 = scmp.eq.s32.totalorder %s17, 7
    %p187 = por %p185, %p186
    %p189 = scmp.ne.s32.totalorder %s172, %s188
    %p190 = scmp.eq.s32.totalorder %s17, 0
    %p191 = por %p189, %p190
    %p192 = scmp.le.s32.totalorder 1, %s11
    %p193 = scmp.lt.s32.totalorder %s11, 9
    %p194 = pnand %p192, %p193
    %p195 = pneg %p194
    // Predicated region
    $region9: #{tpu_custom_call.1} parent=5 // pred_check
      _
    $region10: #{tpu_custom_call.1} parent=5 // pred_check_branch
      %197 = sbr.rel (%p194) target = $region12
    $region11: #{tpu_custom_call.1} parent=5 // pred_region
      %s198 = ssub.s32 %s11, 1
      // Predicated region
      $region13: #{tpu_custom_call.1} parent=11 // pred_check
        %p199 = pneg %p135
      $region14: #{tpu_custom_call.1} parent=11 // pred_check_branch
        %201 = sbr.rel (%p199) target = $region16
      $region15: #{tpu_custom_call.1} parent=11 // pred_region
        _
      $region16: #{tpu_custom_call.1} parent=11 // pred_fallthru
        _
      // Predicated region
      $region17: #{tpu_custom_call.1} parent=11 // pred_check
        %p202 = pneg %p156
      $region18: #{tpu_custom_call.1} parent=11 // pred_check_branch
        %204 = sbr.rel (%p202) target = $region20
      $region19: #{tpu_custom_call.1} parent=11 // pred_region
        _
      $region20: #{tpu_custom_call.1} parent=11 // pred_fallthru
        _
    $region12: #{tpu_custom_call.1} parent=5 // pred_fallthru
      _
    %p205 = scmp.lt.s32.totalorder %s11, 8
    // Predicated region
    $region21: #{tpu_custom_call.1} parent=5 // pred_check
      %p206 = pneg %p205
    $region22: #{tpu_custom_call.1} parent=5 // pred_check_branch
      %208 = sbr.rel (%p206) target = $region24
    $region23: #{tpu_custom_call.1} parent=5 // pred_region
      // Predicated region
      $region25: #{tpu_custom_call.1} parent=23 // pred_check
        %p209 = pneg %p52
      $region26: #{tpu_custom_call.1} parent=23 // pred_check_branch
        %211 = sbr.rel (%p209) target = $region28
      $region27: #{tpu_custom_call.1} parent=23 // pred_region
        %p212 = scmp.lt.s32.totalorder %s18, 1
        %s213 = scalar_select %p212, %s18, 1
        %p214 = scmp.lt.s32.totalorder %s19, 1
        %s215 = scalar_select %p214, %s19, 1
        %s216 = smul.addr %s213, 2
        %s217 = sadd.s32 %s215, %s216
        %s218 = smul.addr %s217, 8
        %s219 = scalar_lea.vmem %s0, %s218
      $region28: #{tpu_custom_call.1} parent=23 // pred_fallthru
        _
      // Predicated region
      $region29: #{tpu_custom_call.1} parent=23 // pred_check
        %p220 = pneg %p80
      $region30: #{tpu_custom_call.1} parent=23 // pred_check_branch
        %222 = sbr.rel (%p220) target = $region32
      $region31: #{tpu_custom_call.1} parent=23 // pred_region
        %p223 = scmp.lt.s32.totalorder %s18, 1
        %s224 = scalar_select %p223, %s18, 1
        %p225 = scmp.lt.s32.totalorder %s20, 1
        %s226 = scalar_select %p225, %s20, 1
        %s227 = smul.addr %s224, 2
        %s228 = sadd.s32 %s226, %s227
        %s229 = smul.addr %s228, 2
        %s230 = scalar_lea.vmem %s1, %s229
      $region32: #{tpu_custom_call.1} parent=23 // pred_fallthru
        _
      // Predicated region
      $region33: #{tpu_custom_call.1} parent=23 // pred_check
        %p231 = pneg %p108
      $region34: #{tpu_custom_call.1} parent=23 // pred_check_branch
        %233 = sbr.rel (%p231) target = $region36
      $region35: #{tpu_custom_call.1} parent=23 // pred_region
        %s234 = smul.u32 16, %s20
        %p235 = scmp.lt.s32.totalorder %s18, 1
        %s236 = scalar_select %p235, %s18, 1
        %p237 = scmp.lt.s32.totalorder %s234, 31
        %s238 = scalar_select %p237, %s234, 31
        %s239 = smul.addr %s236, 32
        %s240 = sadd.s32 %s238, %s239
        %s241 = smul.addr %s240, 8
        %s242 = scalar_lea.vmem %s2, %s241
        %s243 = smul.u32 16, %s20
      $region36: #{tpu_custom_call.1} parent=23 // pred_fallthru
        _
    $region24: #{tpu_custom_call.1} parent=5 // pred_fallthru
      _
    %p244 = scmp.le.s32.totalorder 1, %s11
    %p245 = scmp.lt.s32.totalorder %s11, 9
    %p246 = pnand %p244, %p245
    %p247 = pneg %p246
    // Predicated region
    $region37: #{tpu_custom_call.1} parent=5 // pred_check
      _
    $region38: #{tpu_custom_call.1} parent=5 // pred_check_branch
      %249 = sbr.rel (%p246) target = $region40
    $region39: #{tpu_custom_call.1} parent=5 // pred_region
      %s250 = ssub.s32 %s11, 1
      %p251 = scmp.lt.s32.totalorder %s21, 1
      %s252 = scalar_select %p251, %s21, 1
      %p253 = scmp.lt.s32.totalorder %s22, 1
      %s254 = scalar_select %p253, %s22, 1
      %s255 = smul.addr %s252, 2
      %s256 = sadd.s32 %s254, %s255
      %s257 = smul.addr %s256, 8
      %s258 = scalar_lea.vmem %s0, %s257
      %p259 = pneg %p58
      %p260 = pneg %p55
      %p261 = scmp.lt.s32.totalorder %s21, 1
      %s262 = scalar_select %p261, %s21, 1
      %p263 = scmp.lt.s32.totalorder %s23, 1
      %s264 = scalar_select %p263, %s23, 1
      %s265 = smul.addr %s262, 2
      %s266 = sadd.s32 %s264, %s265
      %s267 = smul.addr %s266, 2
      %s268 = scalar_lea.vmem %s1, %s267
      %p269 = pneg %p86
      %p270 = pneg %p83
      %s271 = smul.u32 16, %s23
      %p272 = scmp.lt.s32.totalorder %s21, 1
      %s273 = scalar_select %p272, %s21, 1
      %p274 = scmp.lt.s32.totalorder %s271, 31
      %s275 = scalar_select %p274, %s271, 31
      %s276 = smul.addr %s273, 32
      %s277 = sadd.s32 %s275, %s276
      %s278 = smul.addr %s277, 8
      %s279 = scalar_lea.vmem %s2, %s278
      %p280 = pneg %p114
      %p281 = pneg %p111
      %p282 = pneg %p135
      %p283 = pneg %p132
      %p284 = pneg %p156
      %p285 = pneg %p153
      %p286 = pneg %p184
      %p287 = pneg %p181
      %p288 = scmp.lt.s32.totalorder %s21, 1
      %s289 = scalar_select %p288, %s21, 1
      %p290 = scmp.lt.s32.totalorder %s22, 1
      %s291 = scalar_select %p290, %s22, 1
      %s292 = smul.addr %s289, 2
      %s293 = sadd.s32 %s291, %s292
      %s294 = smul.addr %s293, 8
      %s295 = scalar_lea.vmem %s5, %s294
      %p296 = scmp.lt.s32.totalorder %s21, 1
      %s297 = scalar_select %p296, %s21, 1
      %p298 = scmp.lt.s32.totalorder %s22, 1
      %s299 = scalar_select %p298, %s22, 1
      %s300 = smul.addr %s297, 2
      %s301 = sadd.s32 %s299, %s300
      %s302 = smul.addr %s301, 8
      %s303 = scalar_lea.vmem %s0, %s302
      %p304 = scmp.lt.s32.totalorder %s21, 1
      %s305 = scalar_select %p304, %s21, 1
      %p306 = scmp.lt.s32.totalorder %s23, 1
      %s307 = scalar_select %p306, %s23, 1
      %s308 = smul.addr %s305, 2
      %s309 = sadd.s32 %s307, %s308
      %s310 = smul.addr %s309, 2
      %s311 = scalar_lea.vmem %s1, %s310
      %s312 = smul.u32 16, %s23
      %p313 = scmp.lt.s32.totalorder %s21, 1
      %s314 = scalar_select %p313, %s21, 1
      %p315 = scmp.lt.s32.totalorder %s312, 31
      %s316 = scalar_select %p315, %s312, 31
      %s317 = smul.addr %s314, 32
      %s318 = sadd.s32 %s316, %s317
      %s319 = smul.addr %s318, 8
      %s320 = scalar_lea.vmem %s2, %s319
      %s321 = smul.u32 16, %s23
      %p322 = scmp.lt.s32.totalorder %s21, 1
      %s323 = scalar_select %p322, %s21, 1
      %p324 = scmp.lt.s32.totalorder %s22, 1
      %s325 = scalar_select %p324, %s22, 1
      %s326 = smul.addr %s323, 2
      %s327 = sadd.s32 %s325, %s326
      %s328 = smul.addr %s327, 8
      %s329 = scalar_lea.vmem %s5, %s328
      %p330 = scmp.eq.s32.totalorder %s23, 0
      // Predicated region
      $region41: #{tpu_custom_call.1} parent=39 // pred_check
        %p331 = pneg %p330
      $region42: #{tpu_custom_call.1} parent=39 // pred_check_branch
        %333 = sbr.rel (%p331) target = $region44
      $region43: #{tpu_custom_call.1} parent=39 // pred_region
        %v334 = vld [vmem:[%s303] sm:$0xff]
        %v335 = vld [vmem:[%s3] sm:$0x1]
        %v337 = vlaneseq
        %v338 = vshrl.u32 %v337, 7
        %v339 = vsub.s32 0, %v338
        %v340 = vrot.slane %v335, %v339
        %v342 = vmul.f32 %v334, %v340
        %vm343 = vcmask 15360
        %344 = vst.msk [vmem:[#allocation3] sm:$0xff] %vm343, %v342
        %v345 = vmul.f32 %v342, %v342
        %v346 = vsel %vm343, %v345, 0.0
        %347 = vadd.xlane.f32.xlu0 %v346
        %v348 = vpop.xlane.xlu0 %347
        %v349 = vmul.f32 %v348, 0.5
        %vm350 = vcmask 7168
        %351 = vst.msk [vmem:[#allocation4] sm:$0xff] %vm350, %v349
        %vm352 = vcmask 23552
        %353 = vst.msk [vmem:[#allocation2] sm:$0xff] %vm352, 0.0
      $region44: #{tpu_custom_call.1} parent=39 // pred_fallthru
        _
      %v354 = vld [vmem:[%s311] sm:$0x3]
      %v355 = vmul.f32 %v354, %v354
      %vm356 = vcmask 1041408
      %v357 = vsel %vm356, %v355, 0.0
      %v358 = vrot.slane %v357, 4
      %v359 = vadd.f32 %v357, %v358
      %v360 = vrot.slane %v359, 2
      %v361 = vadd.f32 %v359, %v360
      %v362 = vrot.slane %v361, 1
      %v363 = vadd.f32 %v361, %v362
      %v364 = vmul.f32 %v363, 0.5
      %v365 = vld [vmem:[#allocation3] sm:$0xff]
      %vm366 = vcmask 15360
      %v368 = vsel %vm366, %v365, 0
      %v371 = vsel %vm356, %v354, 0
      %373 = vmatprep.subr.mxu0 0.0
      %374 = vmatpush1.msra.mxu0 %v371
      %375 = vmatprep.subr.mxu0 0.0
      %376 = vmatpush1.msra.mxu0 0.0
      %377 = vmatprep.subr.mxu0 0.0
      %378 = vmatpush1.msra.mxu0 0.0
      %379 = vmatprep.subr.mxu0 0.0
      %380 = vmatpush1.msra.mxu0 0.0
      %381 = vmatprep.subr.mxu0 0.0
      %382 = vmatpush1.msra.mxu0 0.0
      %383 = vmatprep.subr.mxu0 0.0
      %384 = vmatpush1.msra.mxu0 0.0
      %385 = vmatprep.subr.mxu0 0.0
      %386 = vmatpush1.msra.mxu0 0.0
      %387 = vmatprep.subr.mxu0 0.0
      %388 = vmatpush1.msra.mxu0 0.0
      %389 = vmatprep.subr.mxu0 0.0
      %390 = vmatpush1.msra.mxu0 0.0
      %391 = vmatprep.subr.mxu0 0.0
      %392 = vmatpush1.msra.mxu0 0.0
      %393 = vmatprep.subr.mxu0 0.0
      %394 = vmatpush1.msra.mxu0 0.0
      %395 = vmatprep.subr.mxu0 0.0
      %396 = vmatpush1.msra.mxu0 0.0
      %397 = vmatprep.subr.mxu0 0.0
      %398 = vmatpush1.msra.mxu0 0.0
      %399 = vmatprep.subr.mxu0 0.0
      %400 = vmatpush1.msra.mxu0 0.0
      %401 = vmatprep.subr.mxu0 0.0
      %402 = vmatpush1.msra.mxu0 0.0
      %403 = vmatprep.subr.mxu0 0.0
      %404 = vmatpush1.msra.mxu0 0.0
      %405 = vmatprep.subr.mxu0 0.0
      %406 = vmatpush1.msra.mxu0 0.0
      %407 = vmatprep.subr.mxu0 0.0
      %408 = vmatpush1.msra.mxu0 0.0
      %409 = vmatprep.subr.mxu0 0.0
      %410 = vmatpush1.msra.mxu0 0.0
      %411 = vmatprep.subr.mxu0 0.0
      %412 = vmatpush1.msra.mxu0 0.0
      %413 = vmatprep.subr.mxu0 0.0
      %414 = vmatpush1.msra.mxu0 0.0
      %415 = vmatprep.subr.mxu0 0.0
      %416 = vmatpush1.msra.mxu0 0.0
      %417 = vmatprep.subr.mxu0 0.0
      %418 = vmatpush1.msra.mxu0 0.0
      %419 = vmatprep.subr.mxu0 0.0
      %420 = vmatpush1.msra.mxu0 0.0
      %421 = vmatprep.subr.mxu0 0.0
      %422 = vmatpush1.msra.mxu0 0.0
      %423 = vmatprep.subr.mxu0 0.0
      %424 = vmatpush1.msra.mxu0 0.0
      %425 = vmatprep.subr.mxu0 0.0
      %426 = vmatpush1.msra.mxu0 0.0
      %427 = vmatprep.subr.mxu0 0.0
      %428 = vmatpush1.msra.mxu0 0.0
      %429 = vmatprep.subr.mxu0 0.0
      %430 = vmatpush1.msra.mxu0 0.0
      %431 = vmatprep.subr.mxu0 0.0
      %432 = vmatpush1.msra.mxu0 0.0
      %433 = vmatprep.subr.mxu0 0.0
      %434 = vmatpush1.msra.mxu0 0.0
      %435 = vmatprep.subr.mxu0 0.0
      %436 = vmatpush1.msra.mxu0 0.0
      %437 = vmatprep.mubr.f32.mxu0 0.0
      %438 = vmatmul.mubr.f32.gmra.mrb[0].mxu0 %v368
      %v439 = vpop.f32.mrb[0].mxu0
      %v440 = vadd.f32 0.0, %v439
      %v441 = vpop.f32.mrb[0].mxu0
      %442 = vdwg.mxu0
      %v443 = vsub.f32 %v440, %v364
      %v444 = vld [vmem:[#allocation4] sm:$0xff]
      %446 = vset.pattern.permute.xlu0 0
      %447 = vperm.xlu0 %446, %v444
      %v448 = vpop.permute.xlu0 %447
      %v450 = vsub.f32 %v443, %v448
      %v451 = vmul.f32 %v450, 1.442695
      %v452 = vpow.pop %v451
      %v453 = vld [vmem:[%s320] sm:$0xff]
      %v454 = vld [vmem:[%s320 + $0x8] sm:$0xff]
      %v455 = vld [vmem:[%s320 + $0x10] sm:$0xff]
      %v456 = vld [vmem:[%s320 + $0x18] sm:$0xff]
      %v457 = vld [vmem:[%s320 + $0x20] sm:$0xff]
      %v458 = vld [vmem:[%s320 + $0x28] sm:$0xff]
      %v459 = vld [vmem:[%s320 + $0x30] sm:$0xff]
      %v460 = vld [vmem:[%s320 + $0x38] sm:$0xff]
      %v461 = vld [vmem:[%s320 + $0x40] sm:$0xff]
      %v462 = vld [vmem:[%s320 + $0x48] sm:$0xff]
      %v463 = vld [vmem:[%s320 + $0x50] sm:$0xff]
      %v464 = vld [vmem:[%s320 + $0x58] sm:$0xff]
      %v465 = vld [vmem:[%s320 + $0x60] sm:$0xff]
      %v466 = vld [vmem:[%s320 + $0x68] sm:$0xff]
      %v467 = vld [vmem:[%s320 + $0x70] sm:$0xff]
      %v468 = vld [vmem:[%s320 + $0x78] sm:$0xff]
      %v469 = vld [vmem:[#allocation2] sm:$0xff]
      %470 = vmatprep.subr.mxu0 0.0
      %471 = vmatpush1.msra.mxu0 %v453
      %472 = vmatprep.subr.mxu0 0.0
      %473 = vmatpush1.msra.mxu0 %v454
      %474 = vmatprep.subr.mxu0 0.0
      %475 = vmatpush1.msra.mxu0 %v455
      %476 = vmatprep.subr.mxu0 0.0
      %477 = vmatpush1.msra.mxu0 %v456
      %478 = vmatprep.subr.mxu0 0.0
      %479 = vmatpush1.msra.mxu0 %v457
      %480 = vmatprep.subr.mxu0 0.0
      %481 = vmatpush1.msra.mxu0 %v458
      %482 = vmatprep.subr.mxu0 0.0
      %483 = vmatpush1.msra.mxu0 %v459
      %484 = vmatprep.subr.mxu0 0.0
      %485 = vmatpush1.msra.mxu0 %v460
      %486 = vmatprep.subr.mxu0 0.0
      %487 = vmatpush1.msra.mxu0 %v461
      %488 = vmatprep.subr.mxu0 0.0
      %489 = vmatpush1.msra.mxu0 %v462
      %490 = vmatprep.subr.mxu0 0.0
      %491 = vmatpush1.msra.mxu0 %v463
      %492 = vmatprep.subr.mxu0 0.0
      %493 = vmatpush1.msra.mxu0 %v464
      %494 = vmatprep.subr.mxu0 0.0
      %495 = vmatpush1.msra.mxu0 %v465
      %496 = vmatprep.subr.mxu0 0.0
      %497 = vmatpush1.msra.mxu0 %v466
      %498 = vmatprep.subr.mxu0 0.0
      %499 = vmatpush1.msra.mxu0 %v467
      %500 = vmatprep.subr.mxu0 0.0
      %501 = vmatpush1.msra.mxu0 %v468
      %502 = vmatprep.subr.mxu0 0.0
      %503 = vmatpush1.msra.mxu0 0.0
      %504 = vmatprep.subr.mxu0 0.0
      %505 = vmatpush1.msra.mxu0 0.0
      %506 = vmatprep.subr.mxu0 0.0
      %507 = vmatpush1.msra.mxu0 0.0
      %508 = vmatprep.subr.mxu0 0.0
      %509 = vmatpush1.msra.mxu0 0.0
      %510 = vmatprep.subr.mxu0 0.0
      %511 = vmatpush1.msra.mxu0 0.0
      %512 = vmatprep.subr.mxu0 0.0
      %513 = vmatpush1.msra.mxu0 0.0
      %514 = vmatprep.subr.mxu0 0.0
      %515 = vmatpush1.msra.mxu0 0.0
      %516 = vmatprep.subr.mxu0 0.0
      %517 = vmatpush1.msra.mxu0 0.0
      %518 = vmatprep.subr.mxu0 0.0
      %519 = vmatpush1.msra.mxu0 0.0
      %520 = vmatprep.subr.mxu0 0.0
      %521 = vmatpush1.msra.mxu0 0.0
      %522 = vmatprep.subr.mxu0 0.0
      %523 = vmatpush1.msra.mxu0 0.0
      %524 = vmatprep.subr.mxu0 0.0
      %525 = vmatpush1.msra.mxu0 0.0
      %526 = vmatprep.subr.mxu0 0.0
      %527 = vmatpush1.msra.mxu0 0.0
      %528 = vmatprep.subr.mxu0 0.0
      %529 = vmatpush1.msra.mxu0 0.0
      %530 = vmatprep.subr.mxu0 0.0
      %531 = vmatpush1.msra.mxu0 0.0
      %532 = vmatprep.subr.mxu0 0.0
      %533 = vmatpush1.msra.mxu0 0.0
      %534 = vmatprep.mubr.f32.mxu0 0.0
      %535 = vmatmul.mubr.f32.gmra.mrb[0].mxu0 %v452
      %v536 = vpop.f32.mrb[0].mxu0
      %v537 = vadd.f32 0.0, %v536
      %v538 = vpop.f32.mrb[0].mxu0
      %539 = vdwg.mxu0
      %v540 = vadd.f32 %v469, %v537
      %vm541 = vcmask 23552
      %542 = vst.msk [vmem:[#allocation2] sm:$0xff] %vm541, %v540
      %p543 = scmp.eq.s32.totalorder %s23, 1
      // Predicated region
      $region45: #{tpu_custom_call.1} parent=39 // pred_check
        %p544 = pneg %p543
      $region46: #{tpu_custom_call.1} parent=39 // pred_check_branch
        %546 = sbr.rel (%p544) target = $region48
      $region47: #{tpu_custom_call.1} parent=39 // pred_region
        %v547 = vld [vmem:[#allocation2] sm:$0xff]
        %v548 = vld [vmem:[%s4] sm:$0x1]
        %v550 = vlaneseq
        %v551 = vshrl.u32 %v550, 7
        %v552 = vsub.s32 0, %v551
        %v553 = vrot.slane %v548, %v552
        %v555 = vadd.f32 %v547, %v553
        %556 = vst.msk [vmem:[%s329] sm:$0xff] %vm541, %v555
      $region48: #{tpu_custom_call.1} parent=39 // pred_fallthru
        _
      %p557 = scmp.lt.s32.totalorder %s21, 1
      %s558 = scalar_select %p557, %s21, 1
      %p559 = scmp.lt.s32.totalorder %s22, 1
      %s560 = scalar_select %p559, %s22, 1
      %s561 = smul.addr %s558, 2
      %s562 = sadd.s32 %s560, %s561
      %s563 = smul.addr %s562, 8
      %s564 = scalar_lea.vmem %s5, %s563
      // Predicated region
      $region49: #{tpu_custom_call.1} parent=39 // pred_check
        %p565 = pneg %p181
      $region50: #{tpu_custom_call.1} parent=39 // pred_check_branch
        %567 = sbr.rel (%p565) target = $region52
      $region51: #{tpu_custom_call.1} parent=39 // pred_region
        _
      $region52: #{tpu_custom_call.1} parent=39 // pred_fallthru
        _
    $region40: #{tpu_custom_call.1} parent=5 // pred_fallthru
      _
    %p568 = scmp.le.s32.totalorder 2, %s11
    // Predicated region
    $region53: #{tpu_custom_call.1} parent=5 // pred_check
      %p569 = pneg %p568
    $region54: #{tpu_custom_call.1} parent=5 // pred_check_branch
      %571 = sbr.rel (%p569) target = $region56
    $region55: #{tpu_custom_call.1} parent=5 // pred_region
      %s572 = ssub.s32 %s11, 2
      // Predicated region
      $region57: #{tpu_custom_call.1} parent=55 // pred_check
        %p573 = pneg %p187
      $region58: #{tpu_custom_call.1} parent=55 // pred_check_branch
        %575 = sbr.rel (%p573) target = $region60
      $region59: #{tpu_custom_call.1} parent=55 // pred_region
        %p576 = scmp.lt.s32.totalorder %s24, 1
        %s577 = scalar_select %p576, %s24, 1
        %p578 = scmp.lt.s32.totalorder %s25, 1
        %s579 = scalar_select %p578, %s25, 1
        %s580 = smul.addr %s577, 2
        %s581 = sadd.s32 %s579, %s580
        %s582 = smul.addr %s581, 8
        %s583 = scalar_lea.vmem %s5, %s582
      $region60: #{tpu_custom_call.1} parent=55 // pred_fallthru
        _
    $region56: #{tpu_custom_call.1} parent=5 // pred_fallthru
      _
  $region6: #{tpu_custom_call.1} parent=0 // loop_footer
    %s15 = sadd.s32 1, %s11
  $region7: #{tpu_custom_call.1} parent=0 // loop_footer_branch
    %10 = sbr.rel target = $region3
  $region8: #{tpu_custom_call.1} parent=0 // loop_exit
    _

</llo_original>
